<compile_context>
chip_gen: v6e
topology: v6e:2x2x1
jax: 0.10.0
libtpu: 0.0.40
codegen_flags: <defaults>
</compile_context>

<pallas_src>
from functools import partial
import math

import jax
import jax.numpy as jnp
from jax.experimental import pallas as pl
from jax.experimental.pallas import tpu as pltpu

_EPS = 1e-12  # torch.nn.functional.normalize default eps


def _arcface_kernel(fn_ref, w_ref, o_ref, *, num_subcenters, tc):
    """One class tile.

    fn_ref : (B, D)       bf16  L2-normalized features (same block every step)
    w_ref  : (D, k * TC)  bf16  L2-normalized weights, subcenter-major lane slabs
    o_ref  : (B, TC)      f32   pooled, clamped cosine scores
    """
    # Single wide MXU matmul covering all k subcenters of this class tile.
    scores = jnp.dot(fn_ref[...], w_ref[...],
                     preferred_element_type=jnp.float32)       # (B, k*TC) f32
    # max_pool1d(kernel=k, stride=k) == max over k contiguous, 128-aligned
    # lane slabs of the fused result (pure VPU).
    pooled = scores[:, 0:tc]
    for s in range(1, num_subcenters):
        pooled = jnp.maximum(pooled, scores[:, s * tc:(s + 1) * tc])
    o_ref[...] = jnp.clip(pooled, -1.0, 1.0).astype(o_ref.dtype)


def _vmem_capacity_bytes():
    try:
        return int(pltpu.get_tpu_info().vmem_capacity_bytes)
    except Exception:
        return 64 << 20  # conservative default (v7x-sized VMEM)


def _choose_class_tile(out_features, k, D, B, vmem_cap):
    """Pick (TC, nt): class-tile width and number of class tiles.

    Sized by bytes-per-step: aim for multiple MiB of streamed weight per grid
    step while double-buffered weight/output tiles, the resident features and
    the f32 (B, k*TC) fused-matmul temporary stay well under physical VMEM.
    """
    # VMEM bytes per class column: double-buffered bf16 weight + f32 output
    # tiles, plus the in-kernel f32 matmul result for its k subcenters.
    per_class = 2 * (k * D * 2) + 2 * (B * 4) + (B * k * 4)
    fixed = 2 * (B * D * 2)                       # resident bf16 features
    budget = int(vmem_cap * 0.40)                 # leave compiler headroom
    tc_max = max((budget - fixed) // per_class, 128)

    # Streamed-weight bytes per grid step: bigger on 128-MiB-VMEM chips
    # (v5e/v6e), re-derived smaller for v7x's 64 MiB.
    target_bytes = (4 << 20) if vmem_cap >= (96 << 20) else (2 << 20)
    tc_target = pl.cdiv(target_bytes, k * D * 2)

    tc = min(tc_max, max(tc_target, 128))
    tc = max((tc // 128) * 128, 128)              # lane-dense, unmasked stores
    if tc >= out_features:
        return out_features, 1                    # single full-extent tile

    nt = pl.cdiv(out_features, tc)
    # Rebalance so the last tile is not mostly padding.
    tc = ((pl.cdiv(out_features, nt) + 127) // 128) * 128
    nt = pl.cdiv(out_features, tc)
    return tc, nt


def arcface_head(features, weight, num_subcenters):
    """ArcfaceHead.forward(features) given the raw (out_features*k, D) weight."""
    B, D = features.shape
    C, D2 = weight.shape
    assert D == D2 and C % num_subcenters == 0
    k = num_subcenters
    out_features = C // k

    # --- Feature normalization (per call, O(B*D)), then bf16 for the MXU. ---
    f32 = features.astype(jnp.float32)
    fn = f32 / jnp.maximum(jnp.linalg.norm(f32, axis=-1, keepdims=True), _EPS)
    fn = fn.astype(jnp.bfloat16)

    # --- One-time, cacheable weight prep: normalize in f32, pad the class
    #     dim, re-layout to (D, nt*k*TC) with per-tile subcenter-major lane
    #     slabs, then cast to bf16 for streaming. ----------------------------
    vmem_cap = _vmem_capacity_bytes()
    tc, nt = _choose_class_tile(out_features, k, D, B, vmem_cap)
    o_pad = nt * tc

    w = weight.astype(jnp.float32)
    wn = w / jnp.maximum(jnp.linalg.norm(w, axis=-1, keepdims=True), _EPS)
    w3 = wn.reshape(out_features, k, D)                       # [class, sub, d]
    if o_pad != out_features:
        w3 = jnp.pad(w3, ((0, o_pad - out_features), (0, 0), (0, 0)))
    # (class, sub, d) -> (d, tile, sub, class-in-tile) -> (D, nt*k*TC)
    w4 = w3.reshape(nt, tc, k, D)
    w_packed = jnp.transpose(w4, (3, 0, 2, 1)).reshape(D, nt * k * tc)
    w_packed = w_packed.astype(jnp.bfloat16)
    # TODO(synk): optional int8 (v5e/v6e) or fp8-e4m3 (v7x) weight streaming
    # would halve HBM bytes again at some accuracy cost; not enabled here.

    # --- VMEM budget (no double counting): double-buffered weight/output
    #     tiles + resident features + the f32 fused-matmul temporary. --------
    need = (2 * k * D * tc * 2        # bf16 weight tiles  (x2 buffers)
            + 2 * B * tc * 4          # f32 output tiles   (x2 buffers)
            + 2 * B * D * 2           # bf16 features
            + B * k * tc * 4)         # f32 fused-matmul result
    vmem_limit = int(min(max(need + need // 2 + (4 << 20), 16 << 20),
                         int(vmem_cap * 0.85)))

    out = pl.pallas_call(
        partial(_arcface_kernel, num_subcenters=k, tc=tc),
        out_shape=jax.ShapeDtypeStruct((B, o_pad), jnp.float32),
        grid=(nt,),
        in_specs=[
            pl.BlockSpec((B, D), lambda j: (0, 0)),        # resident features
            pl.BlockSpec((D, k * tc), lambda j: (0, j)),   # streamed weights
        ],
        out_specs=pl.BlockSpec((B, tc), lambda j: (0, j)),
        compiler_params=pltpu.CompilerParams(
            dimension_semantics=("parallel",),  # class tiles are independent
            vmem_limit_bytes=vmem_limit),
        cost_estimate=pl.CostEstimate(
            flops=2 * B * D * (nt * k * tc),
            transcendentals=0,
            bytes_accessed=D * nt * k * tc * 2 + B * D * 2 + B * o_pad * 4),
    )(fn, w_packed)

    return out[:, :out_features] if o_pad != out_features else out


def _xavier_uniform(key, shape, dtype=jnp.float32):
    # nn.init.xavier_uniform_ for a 2D weight (fan_out, fan_in).
    fan_out, fan_in = shape
    bound = math.sqrt(6.0 / (fan_in + fan_out))
    return jax.random.uniform(key, shape, dtype=dtype, minval=-bound, maxval=bound)


def _reference(features, weight, num_subcenters):
    eps = 1e-12
    fn = features / jnp.maximum(
        jnp.linalg.norm(features, axis=-1, keepdims=True), eps)
    wn = weight / jnp.maximum(
        jnp.linalg.norm(weight, axis=-1, keepdims=True), eps)
    scores = fn @ wn.T
    B, C = scores.shape
    scores = scores.reshape(B, C // num_subcenters, num_subcenters).max(axis=-1)
    return jnp.clip(scores, -1.0, 1.0)


if __name__ == "__main__":
    key = jax.random.PRNGKey(0)
    batch, in_features, num_subcenters = 8, 32, 3
    kf, kw, kw2, kw3 = jax.random.split(key, 4)
    features = jax.random.normal(kf, (batch, in_features), dtype=jnp.float32)

    # Config 1: tiny (single full-extent tile, no padding / alignment needed).
    out_features = 16
    weight = _xavier_uniform(kw, (out_features * num_subcenters, in_features))
    out = jax.block_until_ready(arcface_head(features, weight, num_subcenters))
    ref = _reference(features, weight, num_subcenters)
    assert out.shape == (batch, out_features)
    # bf16 feature/weight streaming => ~1e-2 absolute tolerance on cosines.
    assert jnp.allclose(out, ref, atol=2e-2, rtol=0.0), "mismatch (tiny)"

    # Config 2: mid-size — one large class tile on every generation.
    out_features2 = 2048
    weight2 = _xavier_uniform(kw2, (out_features2 * num_subcenters, in_features))
    out2 = jax.block_until_ready(arcface_head(features, weight2, num_subcenters))
    ref2 = _reference(features, weight2, num_subcenters)
    assert out2.shape == (batch, out_features2)
    assert jnp.allclose(out2, ref2, atol=2e-2, rtol=0.0), "mismatch (one tile)"

    # Config 3: large class count — exercises the tiled / pipelined grid
    # (nt >= 2 on every supported VMEM size) and the class-dim padding path.
    out_features3 = 25000
    weight3 = _xavier_uniform(kw3, (out_features3 * num_subcenters, in_features))
    out3 = jax.block_until_ready(arcface_head(features, weight3, num_subcenters))
    ref3 = _reference(features, weight3, num_subcenters)
    assert out3.shape == (batch, out_features3)
    assert jnp.allclose(out3, ref3, atol=2e-2, rtol=0.0), "mismatch (tiled)"

    print("KERNEL_OK")
</pallas_src>

<mosaic_0001>
module attributes {stable_mosaic.version = 11 : i64} {
  func.func @_arcface_kernel(%arg0: i32, %arg1: memref<8x32xbf16, #tpu.memory_space<vmem>>, %arg2: memref<32x48xbf16, #tpu.memory_space<vmem>>, %arg3: memref<8x16xf32, #tpu.memory_space<vmem>>) attributes {dimension_semantics = [#tpu.dimension_semantics<parallel>], iteration_bounds = array<i64: 1>, scalar_prefetch = 0 : i64, scratch_operands = 0 : i64, tpu.core_type = #tpu.core_type<tc>, window_params = [{pipeline_mode = #tpu.pipeline_mode<synchronous>, transform_indices = @transform_0, window_bounds = array<i64: 8, 32>}, {transform_indices = @transform_1, window_bounds = array<i64: 32, 48>}, {transform_indices = @transform_2, window_bounds = array<i64: 8, 16>}]} {
    %c0 = arith.constant 0 : index
    %c0_0 = arith.constant 0 : index
    %0 = vector.load %arg1[%c0, %c0_0] : memref<8x32xbf16, #tpu.memory_space<vmem>>, vector<8x32xbf16>
    %c0_1 = arith.constant 0 : index
    %c0_2 = arith.constant 0 : index
    %1 = vector.load %arg2[%c0_1, %c0_2] : memref<32x48xbf16, #tpu.memory_space<vmem>>, vector<32x48xbf16>
    %cst = arith.constant dense<0.000000e+00> : vector<8x48xf32>
    %2 = tpu.matmul %0, %1, %cst {dimension_numbers = #tpu.dot_dimension_numbers<[1], [0], [0], [1], [0, 0, 1, 1], [], []>} : vector<8x32xbf16>, vector<32x48xbf16>, vector<8x48xf32> -> vector<8x48xf32>
    %3 = vector.extract_strided_slice %2 {offsets = [0, 0], sizes = [8, 16], strides = [1, 1]} : vector<8x48xf32> to vector<8x16xf32>
    %4 = vector.extract_strided_slice %2 {offsets = [0, 16], sizes = [8, 16], strides = [1, 1]} : vector<8x48xf32> to vector<8x16xf32>
    %5 = arith.maximumf %3, %4 : vector<8x16xf32>
    %6 = vector.extract_strided_slice %2 {offsets = [0, 32], sizes = [8, 16], strides = [1, 1]} : vector<8x48xf32> to vector<8x16xf32>
    %7 = arith.maximumf %5, %6 : vector<8x16xf32>
    %cst_3 = arith.constant -1.000000e+00 : f32
    %cst_4 = arith.constant 1.000000e+00 : f32
    %8 = vector.broadcast %cst_3 : f32 to vector<8x16xf32>
    %9 = arith.maximumf %8, %7 : vector<8x16xf32>
    %10 = vector.broadcast %cst_4 : f32 to vector<8x16xf32>
    %11 = arith.minimumf %10, %9 : vector<8x16xf32>
    %c0_5 = arith.constant 0 : index
    %c0_6 = arith.constant 0 : index
    %12 = vector.load %arg3[%c0_5, %c0_6] : memref<8x16xf32, #tpu.memory_space<vmem>>, vector<8x16xf32>
    tpu.vector_store %arg3[%c0_5, %c0_6], %11 {strides = array<i32>} : memref<8x16xf32, #tpu.memory_space<vmem>>, vector<8x16xf32>,
    return
  }
  func.func @transform_0(%arg0: i32) -> (i32, i32) {
    %c0_i32 = arith.constant 0 : i32
    %c0_i32_0 = arith.constant 0 : i32
    %c0_i32_1 = arith.constant 0 : i32
    return %c0_i32, %c0_i32_0 : i32, i32
  }
  func.func @transform_1(%arg0: i32) -> (i32, i32) {
    %c0_i32 = arith.constant 0 : i32
    %c0_i32_0 = arith.constant 0 : i32
    return %c0_i32, %arg0 : i32, i32
  }
  func.func @transform_2(%arg0: i32) -> (i32, i32) {
    %c0_i32 = arith.constant 0 : i32
    %c0_i32_0 = arith.constant 0 : i32
    return %c0_i32, %arg0 : i32, i32
  }
}

</mosaic_0001>

<llo_original>
// kernel: tpu_custom_call.1
$region0: #{tpu_custom_call.1}
  #allocation0 [shape = 'u32[]', space=smem, size = 0x4, offset = 0x4, fixed_abs, tag = 'smem constant byte address 0x4 - core index']
  #allocation1 [shape = 'u32[144,128]{1,0:T(1,128)}', space=vmem, size = 0x12000, scoped, tag = 'internal scratch']
  %s0 = inlined_call_operand.hbm [shape: bf16[8,32], index: 0, kind: input, shape index: {}]
  %s1 = inlined_call_operand.hbm [shape: bf16[32,48], index: 1, kind: input, shape index: {}]
  %s2 = inlined_call_operand.hbm [shape: f32[8,16], index: 2, kind: output, shape index: {}]
  %s3 = sld [smem:[#allocation0]]
  $region26: #{tpu_custom_call.1} parent=0
    _
  %s5 = ssub.s32 1, %s3
  %s6 = scalar_select 0, %s5, %s3
  $region1: #{tpu_custom_call.1} parent=0
    #allocation2 [shape = 'u8[2048]{0}', space=vmem, size = 0x800, scoped, tag = 'input window, operand 0, single buffered']
    #allocation3 [shape = 's32[1]{0}', space=sflag, size = 0x4, scoped, tag = 'scoped memory for tpu_custom_call.1']
    #allocation4 [shape = 's32[1]{0}', space=sflag, size = 0x4, scoped, tag = 'scoped memory for tpu_custom_call.1']
    #allocation5 [shape = 'u8[8192]{0}', space=vmem, size = 0x2000, scoped, tag = 'input window, operand 1, single buffered']
    #allocation6 [shape = 's32[1]{0}', space=sflag, size = 0x4, scoped, tag = 'scoped memory for tpu_custom_call.1']
    #allocation7 [shape = 'u8[4096]{0}', space=vmem, size = 0x1000, scoped, tag = 'output window, operand 0, single buffered']
    %7 = vsyncpa [#allocation3], 0
    %8 = vsyncpa [#allocation6], 0
    %9 = vsyncpa [#allocation4], 0
    // Predicated region
    $region2: #{tpu_custom_call.1} parent=1 // pred_check
      _
    $region3: #{tpu_custom_call.1} parent=1 // pred_check_branch
      %11 = sbr.rel (0) target = $region5
    $region4: #{tpu_custom_call.1} parent=1 // pred_region
      %s13 = ssub.s32 64, 64
      %14 = vsyncadd [#allocation3], %s13
      %s16 = sshll.u32 [#allocation2], 4
      %s17 = int_to_ptr.vmem [resolvable:$true] %s16
      %19 = dma.hbm_to_vmem [thread:$0]  %s0, 64, %s17, [#allocation3]
    $region5: #{tpu_custom_call.1} parent=1 // pred_fallthru
      _
    // Predicated region
    $region6: #{tpu_custom_call.1} parent=1 // pred_check
      _
    $region7: #{tpu_custom_call.1} parent=1 // pred_check_branch
      %21 = sbr.rel (0) target = $region9
    $region8: #{tpu_custom_call.1} parent=1 // pred_region
      %s23 = ssub.s32 256, 256
      %24 = vsyncadd [#allocation6], %s23
      %s25 = sshll.u32 [#allocation5], 4
      %s26 = int_to_ptr.vmem [resolvable:$true] %s25
      %31 = dma.hbm_to_vmem [thread:$0]  %s1, 256, %s26, [#allocation6], 64, 64, 4
    $region9: #{tpu_custom_call.1} parent=1 // pred_fallthru
      _
    // Predicated region
    $region10: #{tpu_custom_call.1} parent=1 // pred_check
      _
    $region11: #{tpu_custom_call.1} parent=1 // pred_check_branch
      %33 = sbr.rel (0) target = $region13
    $region12: #{tpu_custom_call.1} parent=1 // pred_region
      %34 = dma.done [#allocation3], 64
    $region13: #{tpu_custom_call.1} parent=1 // pred_fallthru
      _
    // Predicated region
    $region14: #{tpu_custom_call.1} parent=1 // pred_check
      _
    $region15: #{tpu_custom_call.1} parent=1 // pred_check_branch
      %36 = sbr.rel (0) target = $region17
    $region16: #{tpu_custom_call.1} parent=1 // pred_region
      %37 = dma.done [#allocation6], 256
    $region17: #{tpu_custom_call.1} parent=1 // pred_fallthru
      _
    %v39 = vld [vmem:[#allocation2] sm:$0xf]
    %v40 = vld [vmem:[#allocation5] sm:$0xf]
    %v41 = vld [vmem:[#allocation5 + $0x4] sm:$0xf]
    %v42 = vld [vmem:[#allocation5 + $0x8] sm:$0xf]
    %v43 = vld [vmem:[#allocation5 + $0xc] sm:$0xf]
    %v48 = vunpack.c.l.b16 %v40
    %v49 = vunpack.c.l.b16 %v41
    %v50 = vunpack.c.l.b16 %v42
    %v51 = vunpack.c.l.b16 %v43
    %v52 = vpack.c.b16 %v49, %v48
    %v53 = vpack.c.b16 %v51, %v50
    %vm56 = vcmask 261120
    %v58 = vsel %vm56, %v39, 0
    %60 = vmatprep.subr.bf16.mxu0 0
    %61 = vmatpush1.bf16.msra.mxu0 0
    %62 = vmatprep.subr.bf16.mxu0 0
    %63 = vmatpush1.bf16.msra.mxu0 0
    %64 = vmatprep.subr.bf16.mxu0 0
    %65 = vmatpush1.bf16.msra.mxu0 0
    %66 = vmatprep.subr.bf16.mxu0 0
    %67 = vmatpush1.bf16.msra.mxu0 0
    %68 = vmatprep.subr.bf16.mxu0 0
    %69 = vmatpush1.bf16.msra.mxu0 0
    %70 = vmatprep.subr.bf16.mxu0 0
    %71 = vmatpush1.bf16.msra.mxu0 0
    %72 = vmatprep.subr.bf16.mxu0 0
    %73 = vmatpush1.bf16.msra.mxu0 %v53
    %74 = vmatprep.subr.bf16.mxu0 0
    %75 = vmatpush1.bf16.msra.mxu0 %v52
    %76 = vmatprep.subr.bf16.mxu0 0
    %77 = vmatpush2.bf16.msra.mxu0 0
    %78 = vmatprep.subr.bf16.mxu0 0
    %79 = vmatpush2.bf16.msra.mxu0 0
    %80 = vmatprep.subr.bf16.mxu0 0
    %81 = vmatpush2.bf16.msra.mxu0 0
    %82 = vmatprep.subr.bf16.mxu0 0
    %83 = vmatpush2.bf16.msra.mxu0 0
    %84 = vmatprep.subr.bf16.mxu0 0
    %85 = vmatpush2.bf16.msra.mxu0 0
    %86 = vmatprep.subr.bf16.mxu0 0
    %87 = vmatpush2.bf16.msra.mxu0 0
    %88 = vmatprep.subr.bf16.mxu0 0
    %89 = vmatpush2.bf16.msra.mxu0 0
    %90 = vmatprep.subr.bf16.mxu0 0
    %91 = vmatpush2.bf16.msra.mxu0 0
    %92 = vmatprep.mubr.bf16.mxu0 0
    %93 = vmatmul.mubr.bf16.gmra.mxu0 %v58
    %v94 = vpop.f32.mrf.mxu0
    %v95 = vadd.f32 0.0, %v94
    %v96 = vpop.f32.mrf.mxu0
    %v97 = vpop.f32.mrf.mxu0
    %v98 = vpop.f32.mrf.mxu0
    %99 = vdwg.mxu0
    %101 = vrot.lane.b32.xlu0 %v95, 112
    %v102 = vpop.permute.xlu0 %101
    %v104 = vmax.f32 %v95, %v102
    %105 = vrot.lane.b32.xlu0 %v95, 96
    %v106 = vpop.permute.xlu0 %105
    %v108 = vmax.f32 %v104, %v106
    %v109 = vmax.f32 %v108, -1.0
    %v110 = vmin.f32 %v109, 1.0
    %vm111 = vcmask 130048
    %112 = vst.msk [vmem:[#allocation7] sm:$0xff] %vm111, %v110
    // Predicated region
    $region18: #{tpu_custom_call.1} parent=1 // pred_check
      _
    $region19: #{tpu_custom_call.1} parent=1 // pred_check_branch
      %114 = sbr.rel (0) target = $region21
    $region20: #{tpu_custom_call.1} parent=1 // pred_region
      %s116 = ssub.s32 128, 128
      %117 = vsyncadd [#allocation4], %s116
      %s119 = sshll.u32 [#allocation7], 4
      %s120 = int_to_ptr.vmem [resolvable:$true] %s119
      %122 = dma.vmem_to_hbm [thread:$0]  %s120, 128, %s2, [#allocation4]
    $region21: #{tpu_custom_call.1} parent=1 // pred_fallthru
      _
    // Predicated region
    $region22: #{tpu_custom_call.1} parent=1 // pred_check
      _
    $region23: #{tpu_custom_call.1} parent=1 // pred_check_branch
      %124 = sbr.rel (0) target = $region25
    $region24: #{tpu_custom_call.1} parent=1 // pred_region
      %125 = dma.done [#allocation4], 128
    $region25: #{tpu_custom_call.1} parent=1 // pred_fallthru
      _
    %126 = vsyncpa [#allocation3], 1
    %127 = vsyncpa [#allocation6], 1
    %128 = vsyncpa [#allocation4], 1

</llo_original>
